<compile_context>
chip_gen: v6e
topology: v6e:2x2x1
jax: 0.10.0
libtpu: 0.0.40
codegen_flags: <defaults>
</compile_context>

<pallas_src>
import functools

import jax
import jax.numpy as jnp
from jax.experimental import pallas as pl
from jax.experimental.pallas import tpu as pltpu


def _round_up(x, m):
    return (x + m - 1) // m * m


def _block_vmem_bytes(block_shape, dtype):
    """Layout-aware VMEM footprint of one block (lane pad 128, sublane pad 8*packing)."""
    itemsize = jnp.dtype(dtype).itemsize
    dims = [int(d) for d in block_shape]
    if len(dims) == 1:
        dims = [1] + dims
    packing = max(1, 4 // itemsize)
    sub = _round_up(dims[-2], 8 * packing)
    lane = _round_up(dims[-1], 128)
    lead = 1
    for d in dims[:-2]:
        lead *= d
    return lead * sub * lane * itemsize


def _pick_epilogue_dtype(matmul_dtype):
    """bf16 epilogue on bf16-native VPU/EUP generations (v6e/v7x), f32 otherwise."""
    if jnp.dtype(matmul_dtype) == jnp.dtype(jnp.float32):
        return jnp.float32
    try:
        kind = jax.devices()[0].device_kind.lower()
    except Exception:  # pragma: no cover - device query best-effort
        kind = ""
    if any(tag in kind for tag in ("v2", "v3", "v4", "v5")):
        return jnp.float32  # no bf16 VPU/EUP on these generations
    return jnp.bfloat16


def _attention_kernel(p_ref, projr_ref, w1pt_ref, v_ref, out_ref, *,
                      matmul_dtype, epilogue_dtype):
    # p_ref:     (tb, tj, Dj)  job encodings, native dtype (cast in-kernel, no wrapper pass)
    # projr_ref: (tb, H, 1)    hoisted per-batch rnn projection + bias (f32)
    # w1pt_ref:  (H, Dj)       transposed W1 job slice (resident, matmul dtype)
    # v_ref:     (H, 1)        v projection column (resident, f32)
    # out_ref:   (tb, tj)      attention logits (f32, lane-dense over jobs)
    tb, tj, dj = p_ref.shape
    h = w1pt_ref.shape[0]

    p = p_ref[...].astype(matmul_dtype)                 # in-kernel cast (VPU, hidden by DMA)
    w = jnp.broadcast_to(w1pt_ref[...], (tb, h, dj))
    # Contract Dj (last dim of both operands, MXU trans flags, no XLU transpose inserted).
    # Result (tb, H, tj): job axis on lanes -> full-lane epilogue, relayout-free store.
    s = jnp.einsum('bhd,bjd->bhj', w, p,
                   preferred_element_type=jnp.float32)  # MXU, f32 accumulation

    x = s + projr_ref[...]                              # (tb,H,1) lane-broadcast add, f32 VPU
    act = jnp.tanh(x.astype(epilogue_dtype))            # EUP tanh (bf16 on v6e/v7x, f32 on v5e)
    prod = act * v_ref[...].astype(epilogue_dtype)      # (H,1) broadcast multiply, VPU
    scores = jnp.sum(prod.astype(jnp.float32), axis=1)  # f32 sublane reduce over H -> (tb, tj)
    out_ref[...] = scores.astype(out_ref.dtype)         # lane-dense store (edge tiles masked)


def attention_module(P_tilde_all_jobs, rnn_out_i_star, W1, b1, v, *,
                     matmul_dtype=jnp.bfloat16,
                     epilogue_dtype=None,
                     max_job_tile=1024,
                     rows_per_step=2048):
    """
    P_tilde_all_jobs: (B, J, Dj)
    rnn_out_i_star:   (B, Dr)
    W1:               (Dj + Dr, H)   (x @ W1 + b1 convention, i.e. W1_layer.weight.T)
    b1:               (H,)
    v:                (H,)           (v_layer.weight.squeeze(0), no bias)
    returns:          (B, J) float32 attention logits u_i
    """
    B, J, Dj = P_tilde_all_jobs.shape
    Dr = rnn_out_i_star.shape[-1]
    H = W1.shape[-1]
    assert W1.shape[0] == Dj + Dr

    matmul_dtype = jnp.dtype(matmul_dtype)
    if epilogue_dtype is None:
        epilogue_dtype = _pick_epilogue_dtype(matmul_dtype)
    epilogue_dtype = jnp.dtype(epilogue_dtype)

    # Split W1 so concat([P, rnn_expanded]) @ W1 == P @ W1_p + rnn @ W1_r (hoist rnn part).
    W1_p_t = jnp.transpose(W1[:Dj, :]).astype(matmul_dtype)           # (H, Dj), tiny
    W1_r = W1[Dj:, :].astype(jnp.float32)
    proj_r = (rnn_out_i_star.astype(jnp.float32) @ W1_r
              + b1.astype(jnp.float32)).reshape(B, H, 1)               # (B, H, 1) f32
    v_col = v.reshape(H, 1).astype(jnp.float32)

    # --- job tile: full extent (always legal) or a multiple of 128 (lane-dense) ---
    max_job_tile = max(128, _round_up(int(max_job_tile), 128))
    tj = J if J <= max_job_tile else max_job_tile
    num_j = pl.cdiv(J, tj)

    # --- batch tile: amortize per-step overhead / DMA size when J is small.
    #     Must be a multiple of 8 or equal to B (output/proj block sublane rule). ---
    want_tb = max(1, int(rows_per_step) // max(tj, 1))
    if want_tb >= B:
        tb = B
    else:
        tb = min(B, max(8, (want_tb // 8) * 8))
    num_b = pl.cdiv(B, tb)

    # --- guarantee >= 2 grid steps so both v7x TensorCores get work ---
    if num_b * num_j == 1:
        if J > 128:
            tj = _round_up(pl.cdiv(J, 2), 128)
            num_j = pl.cdiv(J, tj)
        elif B > 8:
            new_tb = _round_up(pl.cdiv(B, 2), 8)
            if new_tb < B:
                tb = new_tb
                num_b = pl.cdiv(B, tb)

    grid = (num_b, num_j)

    # Layout-aware VMEM budget (double-buffered blocks + f32 matmul/act intermediates).
    est = (2 * _block_vmem_bytes((tb, tj, Dj), P_tilde_all_jobs.dtype)
           + 2 * _block_vmem_bytes((tb, H, 1), jnp.float32)
           + 2 * _block_vmem_bytes((tb, tj), jnp.float32)
           + 2 * _block_vmem_bytes((H, Dj), matmul_dtype)
           + 2 * _block_vmem_bytes((H, 1), jnp.float32)
           + 2 * tb * _round_up(H, 8) * _round_up(tj, 128) * 4)
    vmem_limit = int(min(48 * 1024 * 1024,
                         max(32 * 1024 * 1024, 2 * est + (4 << 20))))

    kernel = functools.partial(_attention_kernel,
                               matmul_dtype=matmul_dtype,
                               epilogue_dtype=epilogue_dtype)

    out = pl.pallas_call(
        kernel,
        out_shape=jax.ShapeDtypeStruct((B, J), jnp.float32),
        grid=grid,
        in_specs=[
            # P: one (tb, tj, Dj) slab per (batch-tile, job-tile); native dtype, edge-masked.
            pl.BlockSpec((tb, tj, Dj), lambda b, j: (b, j, 0)),
            # Hoisted per-batch rnn projection as (H, 1) columns per row.
            pl.BlockSpec((tb, H, 1), lambda b, j: (b, 0, 0)),
            # Resident parameters (same block every grid step).
            pl.BlockSpec((H, Dj), lambda b, j: (0, 0)),
            pl.BlockSpec((H, 1), lambda b, j: (0, 0)),
        ],
        out_specs=pl.BlockSpec((tb, tj), lambda b, j: (b, j)),
        compiler_params=pltpu.CompilerParams(
            dimension_semantics=("parallel", "parallel"),
            vmem_limit_bytes=vmem_limit),
    )(P_tilde_all_jobs, proj_r, W1_p_t, v_col)

    return out


def attention_module_ref(P, r, W1, b1, v):
    B, J, _ = P.shape
    r_exp = jnp.broadcast_to(r[:, None, :], (B, J, r.shape[-1]))
    concat = jnp.concatenate([P, r_exp], axis=-1)
    act = jnp.tanh(concat @ W1 + b1)
    return (act @ v[:, None])[..., 0]


if __name__ == "__main__":
    # Small shapes consistent with the module's forward.
    B, J = 2, 8
    job_encoding_dim = 16
    rnn_output_dim = 16
    attention_hidden_dim = 32
    concat_dim = job_encoding_dim + rnn_output_dim

    key = jax.random.PRNGKey(0)
    k_p, k_r, k_w1, k_b1, k_v = jax.random.split(key, 5)

    P_tilde_all_jobs = jax.random.normal(
        k_p, (B, J, job_encoding_dim), dtype=jnp.float32)
    rnn_out_i_star = jax.random.normal(
        k_r, (B, rnn_output_dim), dtype=jnp.float32)

    # Deterministic synthetic parameters (x @ W1 + b1 convention).
    W1 = jax.random.normal(k_w1, (concat_dim, attention_hidden_dim),
                           dtype=jnp.float32) * 0.1
    b1 = jax.random.normal(k_b1, (attention_hidden_dim,), dtype=jnp.float32) * 0.1
    v = jax.random.normal(k_v, (attention_hidden_dim,), dtype=jnp.float32) * 0.1

    ref = attention_module_ref(P_tilde_all_jobs, rnn_out_i_star, W1, b1, v)

    # Default path: bf16 MXU operands (cast in-kernel), generation-gated epilogue dtype.
    scores = attention_module(P_tilde_all_jobs, rnn_out_i_star, W1, b1, v)
    scores = jax.block_until_ready(scores)
    assert scores.shape == (B, J)
    assert jnp.allclose(scores, ref, atol=3e-2, rtol=3e-2), "bf16 path mismatch"

    # Exact f32 path for a tight numerical check of the kernel structure.
    scores_f32 = attention_module(P_tilde_all_jobs, rnn_out_i_star, W1, b1, v,
                                  matmul_dtype=jnp.float32)
    scores_f32 = jax.block_until_ready(scores_f32)
    assert jnp.allclose(scores_f32, ref, atol=1e-5, rtol=1e-5), "f32 path mismatch"

    # Multi-tile / ragged-edge path: forces 128-wide job tiles (masked last tile) and
    # 8-row batch tiles (masked last tile), exercising both "parallel" grid axes.
    B2, J2 = 20, 200
    k_p2, k_r2 = jax.random.split(jax.random.PRNGKey(1), 2)
    P2 = jax.random.normal(k_p2, (B2, J2, job_encoding_dim), dtype=jnp.float32)
    r2 = jax.random.normal(k_r2, (B2, rnn_output_dim), dtype=jnp.float32)
    ref2 = attention_module_ref(P2, r2, W1, b1, v)
    out2 = attention_module(P2, r2, W1, b1, v, matmul_dtype=jnp.float32,
                            max_job_tile=128, rows_per_step=1024)
    out2 = jax.block_until_ready(out2)
    assert out2.shape == (B2, J2)
    assert jnp.allclose(out2, ref2, atol=1e-5, rtol=1e-5), "tiled/ragged path mismatch"

    print("KERNEL_OK")
</pallas_src>

<mosaic_0001>
module attributes {stable_mosaic.version = 11 : i64} {
  func.func @_attention_kernel(%arg0: i32, %arg1: i32, %arg2: memref<2x8x16xf32, #tpu.memory_space<vmem>>, %arg3: memref<2x32x1xf32, #tpu.memory_space<vmem>>, %arg4: memref<32x16xbf16, #tpu.memory_space<vmem>>, %arg5: memref<32x1xf32, #tpu.memory_space<vmem>>, %arg6: memref<2x8xf32, #tpu.memory_space<vmem>>) attributes {dimension_semantics = [#tpu.dimension_semantics<parallel>, #tpu.dimension_semantics<parallel>], iteration_bounds = array<i64: 1, 1>, scalar_prefetch = 0 : i64, scratch_operands = 0 : i64, tpu.core_type = #tpu.core_type<tc>, window_params = [{transform_indices = @transform_0, window_bounds = array<i64: 2, 8, 16>}, {transform_indices = @transform_1, window_bounds = array<i64: 2, 32, 1>}, {pipeline_mode = #tpu.pipeline_mode<synchronous>, transform_indices = @transform_2, window_bounds = array<i64: 32, 16>}, {pipeline_mode = #tpu.pipeline_mode<synchronous>, transform_indices = @transform_3, window_bounds = array<i64: 32, 1>}, {transform_indices = @transform_4, window_bounds = array<i64: 2, 8>}]} {
    %c0 = arith.constant 0 : index
    %c0_0 = arith.constant 0 : index
    %c0_1 = arith.constant 0 : index
    %0 = vector.load %arg2[%c0, %c0_0, %c0_1] : memref<2x8x16xf32, #tpu.memory_space<vmem>>, vector<2x8x16xf32>
    %1 = arith.truncf %0 : vector<2x8x16xf32> to vector<2x8x16xbf16>
    %c0_2 = arith.constant 0 : index
    %c0_3 = arith.constant 0 : index
    %2 = vector.load %arg4[%c0_2, %c0_3] : memref<32x16xbf16, #tpu.memory_space<vmem>>, vector<32x16xbf16>
    %3 = vector.shape_cast %2 : vector<32x16xbf16> to vector<1x32x16xbf16>
    %4 = vector.broadcast %3 : vector<1x32x16xbf16> to vector<2x32x16xbf16>
    "tpu.trace_start"() <{level = 10 : i32, message = "bhd,bjd->bhj"}> : () -> ()
    %cst = arith.constant dense<0.000000e+00> : vector<2x32x8xf32>
    %5 = tpu.matmul %4, %1, %cst {dimension_numbers = #tpu.dot_dimension_numbers<[2], [2], [1], [1], [0, 0, 0, 1, 1, 1], [0], [0]>} : vector<2x32x16xbf16>, vector<2x8x16xbf16>, vector<2x32x8xf32> -> vector<2x32x8xf32>
    "tpu.trace_stop"() : () -> ()
    %c0_4 = arith.constant 0 : index
    %c0_5 = arith.constant 0 : index
    %c0_6 = arith.constant 0 : index
    %6 = vector.load %arg3[%c0_4, %c0_5, %c0_6] : memref<2x32x1xf32, #tpu.memory_space<vmem>>, vector<2x32x1xf32>
    %7 = vector.broadcast %6 : vector<2x32x1xf32> to vector<2x32x8xf32>
    %8 = arith.addf %5, %7 : vector<2x32x8xf32>
    %9 = arith.truncf %8 : vector<2x32x8xf32> to vector<2x32x8xbf16>
    %10 = math.tanh %9 : vector<2x32x8xbf16>
    %c0_7 = arith.constant 0 : index
    %c0_8 = arith.constant 0 : index
    %11 = vector.load %arg5[%c0_7, %c0_8] : memref<32x1xf32, #tpu.memory_space<vmem>>, vector<32x1xf32>
    %12 = arith.truncf %11 : vector<32x1xf32> to vector<32x1xbf16>
    %13 = vector.shape_cast %12 : vector<32x1xbf16> to vector<1x32x1xbf16>
    %14 = vector.broadcast %13 : vector<1x32x1xbf16> to vector<2x32x8xbf16>
    %15 = arith.mulf %10, %14 : vector<2x32x8xbf16>
    %16 = arith.extf %15 : vector<2x32x8xbf16> to vector<2x32x8xf32>
    %cst_9 = arith.constant dense<0.000000e+00> : vector<2x8xf32>
    %17 = vector.multi_reduction <add>, %16, %cst_9 [1] : vector<2x32x8xf32> to vector<2x8xf32>
    %c0_10 = arith.constant 0 : index
    %c0_11 = arith.constant 0 : index
    %18 = vector.load %arg6[%c0_10, %c0_11] : memref<2x8xf32, #tpu.memory_space<vmem>>, vector<2x8xf32>
    tpu.vector_store %arg6[%c0_10, %c0_11], %17 {strides = array<i32>} : memref<2x8xf32, #tpu.memory_space<vmem>>, vector<2x8xf32>,
    return
  }
  func.func @transform_0(%arg0: i32, %arg1: i32) -> (i32, i32, i32) {
    %c0_i32 = arith.constant 0 : i32
    %c0_i32_0 = arith.constant 0 : i32
    return %arg0, %arg1, %c0_i32 : i32, i32, i32
  }
  func.func @transform_1(%arg0: i32, %arg1: i32) -> (i32, i32, i32) {
    %c0_i32 = arith.constant 0 : i32
    %c0_i32_0 = arith.constant 0 : i32
    %c0_i32_1 = arith.constant 0 : i32
    return %arg0, %c0_i32, %c0_i32_0 : i32, i32, i32
  }
  func.func @transform_2(%arg0: i32, %arg1: i32) -> (i32, i32) {
    %c0_i32 = arith.constant 0 : i32
    %c0_i32_0 = arith.constant 0 : i32
    %c0_i32_1 = arith.constant 0 : i32
    return %c0_i32, %c0_i32_0 : i32, i32
  }
  func.func @transform_3(%arg0: i32, %arg1: i32) -> (i32, i32) {
    %c0_i32 = arith.constant 0 : i32
    %c0_i32_0 = arith.constant 0 : i32
    %c0_i32_1 = arith.constant 0 : i32
    return %c0_i32, %c0_i32_0 : i32, i32
  }
  func.func @transform_4(%arg0: i32, %arg1: i32) -> (i32, i32) {
    %c0_i32 = arith.constant 0 : i32
    return %arg0, %arg1 : i32, i32
  }
}

</mosaic_0001>

<llo_original>
// kernel: tpu_custom_call.1
$region0: #{tpu_custom_call.1}
  #allocation0 [shape = 'u32[]', space=smem, size = 0x4, offset = 0x4, fixed_abs, tag = 'smem constant byte address 0x4 - core index']
  #allocation1 [shape = 'u32[144,128]{1,0:T(1,128)}', space=vmem, size = 0x12000, scoped, tag = 'internal scratch']
  %s0 = inlined_call_operand.vmem [shape: f32[2,8,16], index: 0, kind: input, shape index: {}]
  %s1 = inlined_call_operand.vmem [shape: f32[2,32,1], index: 1, kind: input, shape index: {}]
  %s2 = inlined_call_operand.vmem [shape: bf16[32,16], index: 2, kind: input, shape index: {}]
  %s3 = inlined_call_operand.vmem [shape: f32[32,1], index: 3, kind: input, shape index: {}]
  %s4 = inlined_call_operand.hbm [shape: f32[2,8], index: 4, kind: output, shape index: {}]
  %s5 = sld [smem:[#allocation0]]
  $region26: #{tpu_custom_call.1} parent=0
    _
  %s7 = ssub.s32 1, %s5
  %s8 = scalar_select 0, %s7, %s5
  $region1: #{tpu_custom_call.1} parent=0
    #allocation2 [shape = 'u8[1024]{0}', space=vmem, size = 0x400, scoped, tag = 'output window, operand 0, single buffered']
    #allocation3 [shape = 's32[1]{0}', space=sflag, size = 0x4, scoped, tag = 'scoped memory for tpu_custom_call.1']
    %9 = vsyncpa [#allocation3], 0
    // Predicated region
    $region2: #{tpu_custom_call.1} parent=1 // pred_check
      _
    $region3: #{tpu_custom_call.1} parent=1 // pred_check_branch
      %11 = sbr.rel (0) target = $region5
    $region4: #{tpu_custom_call.1} parent=1 // pred_region
      _
    $region5: #{tpu_custom_call.1} parent=1 // pred_fallthru
      _
    // Predicated region
    $region6: #{tpu_custom_call.1} parent=1 // pred_check
      _
    $region7: #{tpu_custom_call.1} parent=1 // pred_check_branch
      %13 = sbr.rel (0) target = $region9
    $region8: #{tpu_custom_call.1} parent=1 // pred_region
      _
    $region9: #{tpu_custom_call.1} parent=1 // pred_fallthru
      _
    // Predicated region
    $region10: #{tpu_custom_call.1} parent=1 // pred_check
      _
    $region11: #{tpu_custom_call.1} parent=1 // pred_check_branch
      %15 = sbr.rel (0) target = $region13
    $region12: #{tpu_custom_call.1} parent=1 // pred_region
      _
    $region13: #{tpu_custom_call.1} parent=1 // pred_fallthru
      _
    // Predicated region
    $region14: #{tpu_custom_call.1} parent=1 // pred_check
      _
    $region15: #{tpu_custom_call.1} parent=1 // pred_check_branch
      %17 = sbr.rel (0) target = $region17
    $region16: #{tpu_custom_call.1} parent=1 // pred_region
      _
    $region17: #{tpu_custom_call.1} parent=1 // pred_fallthru
      _
    %v19 = vld [vmem:[%s0] sm:$0xff]
    %v20 = vld [vmem:[%s0 + $0x8] sm:$0xff]
    %v21 = vpack.c.bf16 %v19, %v19
    %v22 = vpack.c.bf16 %v20, %v20
    %v23 = vld [vmem:[%s2] sm:$0xf]
    %v24 = vld [vmem:[%s2 + $0x4] sm:$0xf]
    %v25 = vld [vmem:[%s2 + $0x8] sm:$0xf]
    %v26 = vld [vmem:[%s2 + $0xc] sm:$0xf]
    %v27 = vld [vmem:[%s1] sm:$0xff]
    %v28 = vld [vmem:[%s1 + $0x8] sm:$0xff]
    %v29 = vld [vmem:[%s1 + $0x10] sm:$0xff]
    %v30 = vld [vmem:[%s1 + $0x18] sm:$0xff]
    %v31 = vld [vmem:[%s1 + $0x20] sm:$0xff]
    %v32 = vld [vmem:[%s1 + $0x28] sm:$0xff]
    %v33 = vld [vmem:[%s1 + $0x30] sm:$0xff]
    %v34 = vld [vmem:[%s1 + $0x38] sm:$0xff]
    %36 = vset.pattern.permute.xlu0 0
    %37 = vperm.xlu0 %36, %v27
    %v38 = vpop.permute.xlu0 %37
    %41 = vset.pattern.permute.xlu0 0
    %42 = vperm.xlu0 %41, %v28
    %v43 = vpop.permute.xlu0 %42
    %46 = vset.pattern.permute.xlu0 0
    %47 = vperm.xlu0 %46, %v29
    %v48 = vpop.permute.xlu0 %47
    %51 = vset.pattern.permute.xlu0 0
    %52 = vperm.xlu0 %51, %v30
    %v53 = vpop.permute.xlu0 %52
    %56 = vset.pattern.permute.xlu0 0
    %57 = vperm.xlu0 %56, %v31
    %v58 = vpop.permute.xlu0 %57
    %61 = vset.pattern.permute.xlu0 0
    %62 = vperm.xlu0 %61, %v32
    %v63 = vpop.permute.xlu0 %62
    %66 = vset.pattern.permute.xlu0 0
    %67 = vperm.xlu0 %66, %v33
    %v68 = vpop.permute.xlu0 %67
    %71 = vset.pattern.permute.xlu0 0
    %72 = vperm.xlu0 %71, %v34
    %v73 = vpop.permute.xlu0 %72
    %v79 = vunpack.c.l.b16 %v23
    %v80 = vunpack.c.l.b16 %v24
    %v81 = vunpack.c.l.b16 %v25
    %v82 = vunpack.c.l.b16 %v26
    %v83 = vpack.c.b16 %v80, %v79
    %v84 = vpack.c.b16 %v82, %v81
    %vm85 = vcmask 130048
    %v87 = vsel %vm85, %v83, 0
    %v90 = vsel %vm85, %v84, 0
    %v93 = vsel %vm85, %v21, 0
    %95 = vmatprep.subr.bf16.mxu0 0
    %96 = vmatpush1.bf16.xpose.msra.mxu0 0
    %97 = vmatprep.subr.bf16.mxu0 0
    %98 = vmatpush1.bf16.xpose.msra.mxu0 0
    %99 = vmatprep.subr.bf16.mxu0 0
    %100 = vmatpush1.bf16.xpose.msra.mxu0 0
    %101 = vmatprep.subr.bf16.mxu0 0
    %102 = vmatpush1.bf16.xpose.msra.mxu0 0
    %103 = vmatprep.subr.bf16.mxu0 0
    %104 = vmatpush1.bf16.xpose.msra.mxu0 0
    %105 = vmatprep.subr.bf16.mxu0 0
    %106 = vmatpush1.bf16.xpose.msra.mxu0 0
    %107 = vmatprep.subr.bf16.mxu0 0
    %108 = vmatpush1.bf16.xpose.msra.mxu0 0
    %109 = vmatprep.subr.bf16.mxu0 0
    %110 = vmatpush1.bf16.xpose.msra.mxu0 %v93
    %111 = vmatprep.subr.bf16.mxu0 0
    %112 = vmatpush2.bf16.xpose.msra.mxu0 0
    %113 = vmatprep.subr.bf16.mxu0 0
    %114 = vmatpush2.bf16.xpose.msra.mxu0 0
    %115 = vmatprep.subr.bf16.mxu0 0
    %116 = vmatpush2.bf16.xpose.msra.mxu0 0
    %117 = vmatprep.subr.bf16.mxu0 0
    %118 = vmatpush2.bf16.xpose.msra.mxu0 0
    %119 = vmatprep.subr.bf16.mxu0 0
    %120 = vmatpush2.bf16.xpose.msra.mxu0 0
    %121 = vmatprep.subr.bf16.mxu0 0
    %122 = vmatpush2.bf16.xpose.msra.mxu0 0
    %123 = vmatprep.subr.bf16.mxu0 0
    %124 = vmatpush2.bf16.xpose.msra.mxu0 0
    %125 = vmatprep.subr.bf16.mxu0 0
    %126 = vmatpush2.bf16.xpose.msra.mxu0 0
    %127 = vmatprep.mubr.bf16.mxu0 0
    %128 = vmatmul.mubr.bf16.gmra.mxu0 %v87
    %v129 = vpop.f32.mrf.mxu0
    %v130 = vadd.f32 %v38, %v129
    %v131 = vpop.f32.mrf.mxu0
    %v132 = vpop.f32.mrf.mxu0
    %v133 = vadd.f32 %v43, %v132
    %v134 = vpop.f32.mrf.mxu0
    %135 = vmatprep.mubr.bf16.mxu0 0
    %136 = vmatmul.mubr.bf16.gmra.mxu0 %v90
    %v137 = vpop.f32.mrf.mxu0
    %v138 = vadd.f32 %v48, %v137
    %v139 = vpop.f32.mrf.mxu0
    %v140 = vpop.f32.mrf.mxu0
    %v141 = vadd.f32 %v53, %v140
    %v142 = vpop.f32.mrf.mxu0
    %143 = vdwg.mxu0
    %v145 = vsel %vm85, %v22, 0
    %147 = vmatprep.subr.bf16.mxu0 0
    %148 = vmatpush1.bf16.xpose.msra.mxu0 0
    %149 = vmatprep.subr.bf16.mxu0 0
    %150 = vmatpush1.bf16.xpose.msra.mxu0 0
    %151 = vmatprep.subr.bf16.mxu0 0
    %152 = vmatpush1.bf16.xpose.msra.mxu0 0
    %153 = vmatprep.subr.bf16.mxu0 0
    %154 = vmatpush1.bf16.xpose.msra.mxu0 0
    %155 = vmatprep.subr.bf16.mxu0 0
    %156 = vmatpush1.bf16.xpose.msra.mxu0 0
    %157 = vmatprep.subr.bf16.mxu0 0
    %158 = vmatpush1.bf16.xpose.msra.mxu0 0
    %159 = vmatprep.subr.bf16.mxu0 0
    %160 = vmatpush1.bf16.xpose.msra.mxu0 0
    %161 = vmatprep.subr.bf16.mxu0 0
    %162 = vmatpush1.bf16.xpose.msra.mxu0 %v145
    %163 = vmatprep.subr.bf16.mxu0 0
    %164 = vmatpush2.bf16.xpose.msra.mxu0 0
    %165 = vmatprep.subr.bf16.mxu0 0
    %166 = vmatpush2.bf16.xpose.msra.mxu0 0
    %167 = vmatprep.subr.bf16.mxu0 0
    %168 = vmatpush2.bf16.xpose.msra.mxu0 0
    %169 = vmatprep.subr.bf16.mxu0 0
    %170 = vmatpush2.bf16.xpose.msra.mxu0 0
    %171 = vmatprep.subr.bf16.mxu0 0
    %172 = vmatpush2.bf16.xpose.msra.mxu0 0
    %173 = vmatprep.subr.bf16.mxu0 0
    %174 = vmatpush2.bf16.xpose.msra.mxu0 0
    %175 = vmatprep.subr.bf16.mxu0 0
    %176 = vmatpush2.bf16.xpose.msra.mxu0 0
    %177 = vmatprep.subr.bf16.mxu0 0
    %178 = vmatpush2.bf16.xpose.msra.mxu0 0
    %179 = vmatprep.mubr.bf16.mxu0 0
    %180 = vmatmul.mubr.bf16.gmra.mxu0 %v87
    %v181 = vpop.f32.mrf.mxu0
    %v182 = vadd.f32 %v58, %v181
    %v183 = vpop.f32.mrf.mxu0
    %v184 = vpop.f32.mrf.mxu0
    %v185 = vadd.f32 %v63, %v184
    %v186 = vpop.f32.mrf.mxu0
    %187 = vmatprep.mubr.bf16.mxu0 0
    %188 = vmatmul.mubr.bf16.gmra.mxu0 %v90
    %v189 = vpop.f32.mrf.mxu0
    %v190 = vadd.f32 %v68, %v189
    %v191 = vpop.f32.mrf.mxu0
    %v192 = vpop.f32.mrf.mxu0
    %v193 = vadd.f32 %v73, %v192
    %v194 = vpop.f32.mrf.mxu0
    %195 = vdwg.mxu0
    %v196 = vpack.c.bf16 %v133, %v130
    %v197 = vpack.c.bf16 %v141, %v138
    %v198 = vpack.c.bf16 %v185, %v182
    %v199 = vpack.c.bf16 %v193, %v190
    %v200 = vtanh.bf16.pop %v196
    %v201 = vtanh.bf16.pop %v197
    %v202 = vtanh.bf16.pop %v198
    %v203 = vtanh.bf16.pop %v199
    %v204 = vld [vmem:[%s3] sm:$0xff]
    %v205 = vld [vmem:[%s3 + $0x8] sm:$0xff]
    %v206 = vld [vmem:[%s3 + $0x10] sm:$0xff]
    %v207 = vld [vmem:[%s3 + $0x18] sm:$0xff]
    %v208 = vpack.c.bf16 %v205, %v204
    %v209 = vpack.c.bf16 %v207, %v206
    %211 = vset.pattern.permute.xlu0 0
    %212 = vperm.xlu0 %211, %v208
    %v213 = vpop.permute.xlu0 %212
    %216 = vset.pattern.permute.xlu0 0
    %217 = vperm.xlu0 %216, %v209
    %v218 = vpop.permute.xlu0 %217
    %v220 = vmul.bf16 %v200, %v213
    %v221 = vmul.bf16 %v201, %v218
    %v222 = vmul.bf16 %v202, %v213
    %v223 = vmul.bf16 %v203, %v218
    %v224 = vunpack.c.l.bf16 %v220
    %v225 = vunpack.c.h.bf16 %v220
    %v226 = vunpack.c.l.bf16 %v221
    %v227 = vunpack.c.h.bf16 %v221
    %v228 = vunpack.c.l.bf16 %v222
    %v229 = vunpack.c.h.bf16 %v222
    %v230 = vunpack.c.l.bf16 %v223
    %v231 = vunpack.c.h.bf16 %v223
    %vm232 = vcmask 64512
    %v233 = vsel %vm232, %v224, 0.0
    %v234 = vsel %vm232, %v225, 0.0
    %v235 = vadd.f32 %v233, %v234
    %v236 = vsel %vm232, %v226, 0.0
    %v237 = vadd.f32 %v235, %v236
    %v238 = vsel %vm232, %v227, 0.0
    %v239 = vadd.f32 %v237, %v238
    %v240 = vrot.slane %v239, 4
    %v241 = vadd.f32 %v239, %v240
    %v242 = vrot.slane %v241, 2
    %v243 = vadd.f32 %v241, %v242
    %v244 = vrot.slane %v243, 1
    %v245 = vadd.f32 %v243, %v244
    %v246 = vsel %vm232, %v228, 0.0
    %v247 = vsel %vm232, %v229, 0.0
    %v248 = vadd.f32 %v246, %v247
    %v249 = vsel %vm232, %v230, 0.0
    %v250 = vadd.f32 %v248, %v249
    %v251 = vsel %vm232, %v231, 0.0
    %v252 = vadd.f32 %v250, %v251
    %v253 = vrot.slane %v252, 4
    %v254 = vadd.f32 %v252, %v253
    %v255 = vrot.slane %v254, 2
    %v256 = vadd.f32 %v254, %v255
    %v257 = vrot.slane %v256, 1
    %v258 = vadd.f32 %v256, %v257
    %vm261 = vcmask 1041409
    %v262 = vsel %vm261, %v258, %v245
    %vm264 = vcmask 58368
    %265 = vst.msk [vmem:[#allocation2] sm:$0x3] %vm264, %v262
    // Predicated region
    $region18: #{tpu_custom_call.1} parent=1 // pred_check
      _
    $region19: #{tpu_custom_call.1} parent=1 // pred_check_branch
      %267 = sbr.rel (0) target = $region21
    $region20: #{tpu_custom_call.1} parent=1 // pred_region
      %s269 = ssub.s32 32, 32
      %270 = vsyncadd [#allocation3], %s269
      %s272 = sshll.u32 [#allocation2], 4
      %s273 = int_to_ptr.vmem [resolvable:$true] %s272
      %275 = dma.vmem_to_hbm [thread:$0]  %s273, 32, %s4, [#allocation3]
    $region21: #{tpu_custom_call.1} parent=1 // pred_fallthru
      _
    // Predicated region
    $region22: #{tpu_custom_call.1} parent=1 // pred_check
      _
    $region23: #{tpu_custom_call.1} parent=1 // pred_check_branch
      %277 = sbr.rel (0) target = $region25
    $region24: #{tpu_custom_call.1} parent=1 // pred_region
      %278 = dma.done [#allocation3], 32
    $region25: #{tpu_custom_call.1} parent=1 // pred_fallthru
      _
    %279 = vsyncpa [#allocation3], 1

</llo_original>
